<compile_context>
chip_gen: v7x
topology: tpu7x:2x2x1
jax: 0.10.0
libtpu: 0.0.40
codegen_flags: <defaults>
</compile_context>

<pallas_src>
import functools

import jax
import jax.numpy as jnp
from jax.experimental import pallas as pl
from jax.experimental.pallas import tpu as pltpu

_LANE = 128          # lane width (last dim of every block)
_BLOCK_ROWS = 8192   # 8192 * 128 * 4B = 4 MiB per input tile (f32). Kept the
                     # same for narrower input dtypes: in-kernel f32
                     # intermediates dominate VMEM, and this keeps the total
                     # footprint well under v7x's 64 MiB physical VMEM.


def _focal_loss_kernel(x_ref, y_ref, psum_ref, *, alpha, gamma, tm, total_rows,
                       need_mask):
    # Inputs arrive in their original dtype; cast per-tile in VMEM (VPU).
    x = x_ref[...].astype(jnp.float32)   # "logits" (must lie in [0,1] for BCELoss)
    y = y_ref[...].astype(jnp.float32)   # binary labels

    is_pos = y == 1.0

    # 1 - pt = where(pos, 1 - sigmoid(x), sigmoid(x)) == sigmoid(where(pos,-x,x))
    # -> single sigmoid, no intermediate pt.
    one_m_pt = jax.nn.sigmoid(jnp.where(is_pos, -x, x))

    # nn.BCELoss(reduction='none')(x, y) with PyTorch's -100 log clamp, fused to
    # a single log. NOTE: exact only for labels strictly in {0,1} (the module
    # itself treats labels as binary via `label == 1`).
    ce = -jnp.maximum(jnp.log(jnp.where(is_pos, x, 1.0 - x)), jnp.float32(-100.0))

    alpha_t = jnp.where(is_pos, jnp.float32(alpha), jnp.float32(1.0 - alpha))

    # (1 - pt) ** gamma: integer gamma -> repeated VPU multiplies (no EUP pow).
    g = float(gamma)
    if g == int(g) and int(g) >= 0:
        gi = int(g)
        if gi == 0:
            focal = jnp.ones_like(one_m_pt)
        else:
            focal = one_m_pt
            for _ in range(gi - 1):
                focal = focal * one_m_pt
    else:
        focal = jnp.power(one_m_pt, jnp.float32(g))

    loss = alpha_t * focal * ce

    def write_partial(vals):
        # Lane-dense (8, 128) partial sum. Splitting the sublane dim into
        # (tm//8, 8) is tile-aligned and the axis-0 sum is pure VPU adds.
        if tm % 8 == 0:
            psum_ref[0] = jnp.sum(vals.reshape(tm // 8, 8, _LANE), axis=0)
        else:
            # Tiny single-block case (tm < 8): one sublane reduce, write row 0.
            col = jnp.sum(vals, axis=0, keepdims=True)             # (1, LANE)
            rid = jax.lax.broadcasted_iota(jnp.int32, (8, _LANE), 0)
            psum_ref[0] = jnp.where(rid == 0, col, jnp.float32(0.0))

    if need_mask:
        # Only the last (partial) grid step pays the masking cost; full blocks
        # take the unmasked branch. Use a select (NOT multiply-by-mask): the
        # garbage rows beyond `valid_rows` can be NaN/Inf through log().
        i = pl.program_id(0)
        last = pl.num_programs(0) - 1

        @pl.when(i != last)
        def _():
            write_partial(loss)

        @pl.when(i == last)
        def _():
            rid = jax.lax.broadcasted_iota(jnp.int32, loss.shape, 0)
            valid_rows = total_rows - i * tm
            write_partial(jnp.where(rid < valid_rows, loss, jnp.float32(0.0)))
    else:
        write_partial(loss)


def _round_up(x, m):
    return ((x + m - 1) // m) * m


def _focal_elementwise(x, y, alpha, gamma):
    """Plain-JAX focal loss, used only for the (<128 elem) non-aligned tail."""
    x = x.astype(jnp.float32)
    y = y.astype(jnp.float32)
    is_pos = y == 1.0
    one_m_pt = jax.nn.sigmoid(jnp.where(is_pos, -x, x))
    ce = -jnp.maximum(jnp.log(jnp.where(is_pos, x, 1.0 - x)), -100.0)
    alpha_t = jnp.where(is_pos, alpha, 1.0 - alpha)
    return alpha_t * jnp.power(one_m_pt, gamma) * ce


def focal_loss(logits, label, alpha=0.25, gamma=2.0, reduction="mean",
               block_rows=_BLOCK_ROWS):
    """Pallas TPU implementation of FocalLoss.forward (reduction 'mean'/'sum')."""
    assert block_rows % 8 == 0 and block_rows >= 8
    x_flat = logits.reshape(-1)   # keep original dtype; cast happens in-kernel
    y_flat = label.reshape(-1)
    n = x_flat.shape[0]

    # Lane-aligned prefix goes through the kernel (zero-copy reshape when n is
    # already a multiple of 128); the <128-element tail is folded in below.
    n_main = (n // _LANE) * _LANE
    tail = n - n_main

    total = jnp.float32(0.0)

    if n_main > 0:
        if tail:
            x2d = x_flat[:n_main].reshape(n_main // _LANE, _LANE)
            y2d = y_flat[:n_main].reshape(n_main // _LANE, _LANE)
        else:
            x2d = x_flat.reshape(n_main // _LANE, _LANE)
            y2d = y_flat.reshape(n_main // _LANE, _LANE)
        rows = n_main // _LANE

        # Tile choice: single full block only for small inputs; medium inputs
        # split into >= 2 grid steps so both v7x TensorCores get work; large
        # inputs use block_rows tiles. tm never exceeds rows.
        half = max(8, block_rows // 2)
        if rows < 8:
            tm = rows                                    # block == full array
        elif rows <= half:
            tm = (rows // 8) * 8
        else:
            tm = min(block_rows, _round_up(pl.cdiv(rows, 2), 8))
            tm = min(tm, (rows // 8) * 8)
        grid_n = pl.cdiv(rows, tm)
        need_mask = (rows % tm) != 0                     # last block is partial

        # Explicit VMEM limit: double-buffered inputs + headroom for f32
        # intermediates; >16 MiB (v5e scoped default), capped at 48 MiB so it
        # stays within v7x's 64 MiB physical VMEM.
        in_bytes = (jnp.dtype(x2d.dtype).itemsize + jnp.dtype(y2d.dtype).itemsize)
        dbuf = 2 * tm * _LANE * in_bytes
        interm = 8 * tm * _LANE * 4
        vmem_limit = int(min(48 * 2**20, max(16 * 2**20, dbuf + interm + (2 << 20))))

        partials = pl.pallas_call(
            functools.partial(_focal_loss_kernel, alpha=float(alpha),
                              gamma=float(gamma), tm=tm, total_rows=rows,
                              need_mask=need_mask),
            out_shape=jax.ShapeDtypeStruct((grid_n, 8, _LANE), jnp.float32),
            grid_spec=pltpu.PrefetchScalarGridSpec(
                num_scalar_prefetch=0,
                grid=(grid_n,),
                in_specs=[
                    pl.BlockSpec((tm, _LANE), lambda i: (i, 0)),
                    pl.BlockSpec((tm, _LANE), lambda i: (i, 0)),
                ],
                out_specs=pl.BlockSpec((1, 8, _LANE), lambda i: (i, 0, 0)),
            ),
            compiler_params=pltpu.CompilerParams(
                dimension_semantics=("parallel",),       # no carried state
                vmem_limit_bytes=vmem_limit),
        )(x2d, y2d)
        total = total + jnp.sum(partials)                # tiny final tree-reduce

    if tail:
        total = total + jnp.sum(
            _focal_elementwise(x_flat[n_main:], y_flat[n_main:],
                               float(alpha), float(gamma)))

    if reduction == "mean":
        return total / jnp.float32(n)
    if reduction == "sum":
        return total
    # TODO(synk): reduction='none' (elementwise output) not implemented in-kernel.
    raise NotImplementedError("only 'mean' and 'sum' reductions supported")


def _focal_loss_ref_elementwise(logits, label, alpha=0.25, gamma=2.0):
    # Independent reference: two-log BCE form, jnp.power, 1 - sigmoid.
    x = logits.astype(jnp.float32)
    y = label.astype(jnp.float32)
    probs = jax.nn.sigmoid(x)
    pt = jnp.where(y == 1.0, probs, 1.0 - probs)
    alpha_t = jnp.where(y == 1.0, alpha, 1.0 - alpha)
    ce = -(y * jnp.maximum(jnp.log(x), -100.0)
           + (1.0 - y) * jnp.maximum(jnp.log(1.0 - x), -100.0))
    return alpha_t * jnp.power(1.0 - pt, gamma) * ce


if __name__ == "__main__":
    key = jax.random.PRNGKey(0)
    k1, k2, k3, k4, k5, k6 = jax.random.split(key, 6)

    # BCELoss requires its input in [0, 1]; the module feeds "logits" straight
    # into BCELoss, so the valid input domain is probabilities in [0, 1].
    B, C, H, W = 2, 4, 16, 16
    logits = jax.random.uniform(k1, (B, C, H, W), dtype=jnp.float32,
                                minval=1e-4, maxval=1.0 - 1e-4)
    label = jax.random.bernoulli(k2, p=0.3, shape=(B, C, H, W)).astype(jnp.float32)

    ref_elem = _focal_loss_ref_elementwise(logits, label, alpha=0.25, gamma=2.0)

    # mean reduction (lane-aligned, single-block fast path)
    out_mean = jax.block_until_ready(
        focal_loss(logits, label, alpha=0.25, gamma=2.0, reduction="mean"))
    assert jnp.allclose(out_mean, jnp.mean(ref_elem), rtol=1e-5, atol=1e-6), (
        out_mean, jnp.mean(ref_elem))

    # sum reduction
    out_sum = jax.block_until_ready(
        focal_loss(logits, label, alpha=0.25, gamma=2.0, reduction="sum"))
    assert jnp.allclose(out_sum, jnp.sum(ref_elem), rtol=1e-5, atol=1e-5), (
        out_sum, jnp.sum(ref_elem))

    # odd shape + small block_rows override: multi-block path, masked last
    # block, and the non-lane-aligned plain-JAX tail (1155 = 9*128 + 3).
    shape2 = (3, 5, 7, 11)
    logits2 = jax.random.uniform(k3, shape2, dtype=jnp.float32,
                                 minval=1e-4, maxval=1.0 - 1e-4)
    label2 = jax.random.bernoulli(k4, p=0.3, shape=shape2).astype(jnp.float32)
    ref2 = jnp.mean(_focal_loss_ref_elementwise(logits2, label2, 0.25, 2.0))
    out2 = jax.block_until_ready(
        focal_loss(logits2, label2, alpha=0.25, gamma=2.0, reduction="mean",
                   block_rows=8))
    assert jnp.allclose(out2, ref2, rtol=1e-5, atol=1e-6), (out2, ref2)

    # tiny input: single sub-8-row block (full-array BlockSpec) + tail.
    shape3 = (2, 3, 5, 7)   # 210 = 1*128 + 82
    logits3 = jax.random.uniform(k5, shape3, dtype=jnp.float32,
                                 minval=1e-4, maxval=1.0 - 1e-4)
    label3 = jax.random.bernoulli(k6, p=0.3, shape=shape3).astype(jnp.float32)
    ref3 = jnp.mean(_focal_loss_ref_elementwise(logits3, label3, 0.25, 2.0))
    out3 = jax.block_until_ready(
        focal_loss(logits3, label3, alpha=0.25, gamma=2.0, reduction="mean"))
    assert jnp.allclose(out3, ref3, rtol=1e-5, atol=1e-6), (out3, ref3)

    print("KERNEL_OK")
</pallas_src>

<mosaic_0001>
module attributes {stable_mosaic.version = 11 : i64} {
  func.func @_focal_loss_kernel(%arg0: i32, %arg1: memref<16x128xf32, #tpu.memory_space<vmem>>, %arg2: memref<16x128xf32, #tpu.memory_space<vmem>>, %arg3: memref<1x8x128xf32, #tpu.memory_space<vmem>>) attributes {dimension_semantics = [#tpu.dimension_semantics<parallel>], iteration_bounds = array<i64: 1>, scalar_prefetch = 0 : i64, scratch_operands = 0 : i64, tpu.core_type = #tpu.core_type<tc>, window_params = [{transform_indices = @transform_0, window_bounds = array<i64: 16, 128>}, {transform_indices = @transform_1, window_bounds = array<i64: 16, 128>}, {transform_indices = @transform_2, window_bounds = array<i64: 1, 8, 128>}]} {
    %c0 = arith.constant 0 : index
    %c0_0 = arith.constant 0 : index
    %0 = vector.load %arg1[%c0, %c0_0] : memref<16x128xf32, #tpu.memory_space<vmem>>, vector<16x128xf32>
    %c0_1 = arith.constant 0 : index
    %c0_2 = arith.constant 0 : index
    %1 = vector.load %arg2[%c0_1, %c0_2] : memref<16x128xf32, #tpu.memory_space<vmem>>, vector<16x128xf32>
    %cst = arith.constant 1.000000e+00 : f32
    %2 = vector.broadcast %cst : f32 to vector<16x128xf32>
    %3 = arith.cmpf oeq, %1, %2 : vector<16x128xf32>
    %cst_3 = arith.constant 0.000000e+00 : f32
    %4 = vector.broadcast %cst_3 : f32 to vector<16x128xf32>
    %5 = arith.subf %4, %0 : vector<16x128xf32>
    %6 = arith.select %3, %5, %0 : vector<16x128xi1>, vector<16x128xf32>
    %7 = arith.negf %6 : vector<16x128xf32>
    %8 = math.exp %7 : vector<16x128xf32>
    %cst_4 = arith.constant 1.000000e+00 : f32
    %9 = vector.broadcast %cst_4 : f32 to vector<16x128xf32>
    %10 = arith.addf %9, %8 : vector<16x128xf32>
    %11 = arith.divf %9, %10 : vector<16x128xf32>
    %cst_5 = arith.constant 1.000000e+00 : f32
    %12 = vector.broadcast %cst_5 : f32 to vector<16x128xf32>
    %13 = arith.subf %12, %0 : vector<16x128xf32>
    %14 = arith.select %3, %0, %13 : vector<16x128xi1>, vector<16x128xf32>
    %15 = math.log %14 : vector<16x128xf32>
    %cst_6 = arith.constant -1.000000e+02 : f32
    %16 = vector.broadcast %cst_6 : f32 to vector<16x128xf32>
    %17 = arith.maximumf %15, %16 : vector<16x128xf32>
    %cst_7 = arith.constant 0.000000e+00 : f32
    %18 = vector.broadcast %cst_7 : f32 to vector<16x128xf32>
    %19 = arith.subf %18, %17 : vector<16x128xf32>
    %cst_8 = arith.constant 2.500000e-01 : f32
    %cst_9 = arith.constant 7.500000e-01 : f32
    %20 = vector.broadcast %cst_8 : f32 to vector<16x128xf32>
    %21 = vector.broadcast %cst_9 : f32 to vector<16x128xf32>
    %22 = arith.select %3, %20, %21 : vector<16x128xi1>, vector<16x128xf32>
    %23 = arith.mulf %11, %11 : vector<16x128xf32>
    %24 = arith.mulf %22, %23 : vector<16x128xf32>
    %25 = arith.mulf %24, %19 : vector<16x128xf32>
    %26 = vector.shape_cast %25 : vector<16x128xf32> to vector<2x8x128xf32>
    %cst_10 = arith.constant dense<0.000000e+00> : vector<8x128xf32>
    %27 = vector.multi_reduction <add>, %26, %cst_10 [0] : vector<2x8x128xf32> to vector<8x128xf32>
    %c0_11 = arith.constant 0 : index
    %c0_12 = arith.constant 0 : index
    %c0_13 = arith.constant 0 : index
    %28 = vector.load %arg3[%c0_11, %c0_12, %c0_13] : memref<1x8x128xf32, #tpu.memory_space<vmem>>, vector<1x8x128xf32>
    %29 = vector.shape_cast %28 : vector<1x8x128xf32> to vector<8x128xf32>
    %30 = vector.shape_cast %27 : vector<8x128xf32> to vector<1x8x128xf32>
    tpu.vector_store %arg3[%c0_11, %c0_12, %c0_13], %30 {strides = array<i32>} : memref<1x8x128xf32, #tpu.memory_space<vmem>>, vector<1x8x128xf32>,
    return
  }
  func.func @transform_0(%arg0: i32) -> (i32, i32) {
    %c0_i32 = arith.constant 0 : i32
    %c0_i32_0 = arith.constant 0 : i32
    return %arg0, %c0_i32 : i32, i32
  }
  func.func @transform_1(%arg0: i32) -> (i32, i32) {
    %c0_i32 = arith.constant 0 : i32
    %c0_i32_0 = arith.constant 0 : i32
    return %arg0, %c0_i32 : i32, i32
  }
  func.func @transform_2(%arg0: i32) -> (i32, i32, i32) {
    %c0_i32 = arith.constant 0 : i32
    %c0_i32_0 = arith.constant 0 : i32
    %c0_i32_1 = arith.constant 0 : i32
    return %arg0, %c0_i32, %c0_i32_0 : i32, i32, i32
  }
}

</mosaic_0001>

<llo_original>
// kernel: tpu_custom_call.1
$region0: #{tpu_custom_call.1}
  #allocation0 [shape = 'u32[]', space=smem, size = 0x4, offset = 0x4, fixed_abs, tag = 'smem constant byte address 0x4 - core index']
  #allocation1 [shape = 'u32[144,128]{1,0:T(1,128)}', space=vmem, size = 0x12000, scoped, tag = 'internal scratch']
  %s0 = inlined_call_operand.hbm [shape: f32[16,128], index: 0, kind: input, shape index: {}]
  %s1 = inlined_call_operand.hbm [shape: f32[16,128], index: 1, kind: input, shape index: {}]
  %s2 = inlined_call_operand.hbm [shape: f32[1,8,128], index: 2, kind: output, shape index: {}]
  %s3 = sld [smem:[#allocation0]]
  $region26: #{tpu_custom_call.1} parent=0
    _
  %s5 = ssub.s32 1, %s3
  %s6 = scalar_select 0, %s5, %s3
  $region1: #{tpu_custom_call.1} parent=0
    #allocation2 [shape = 'u8[8192]{0}', space=vmem, size = 0x2000, scoped, tag = 'input window, operand 0, single buffered']
    #allocation3 [shape = 's32[1]{0}', space=sflag, size = 0x4, scoped, tag = 'scoped memory for tpu_custom_call.1']
    #allocation4 [shape = 's32[1]{0}', space=sflag, size = 0x4, scoped, tag = 'scoped memory for tpu_custom_call.1']
    #allocation5 [shape = 'u8[8192]{0}', space=vmem, size = 0x2000, scoped, tag = 'input window, operand 1, single buffered']
    #allocation6 [shape = 's32[1]{0}', space=sflag, size = 0x4, scoped, tag = 'scoped memory for tpu_custom_call.1']
    #allocation7 [shape = 'u8[4096]{0}', space=vmem, size = 0x1000, scoped, tag = 'output window, operand 0, single buffered']
    %7 = vsyncpa [#allocation3], 0
    %8 = vsyncpa [#allocation6], 0
    %9 = vsyncpa [#allocation4], 0
    // Predicated region
    $region2: #{tpu_custom_call.1} parent=1 // pred_check
      _
    $region3: #{tpu_custom_call.1} parent=1 // pred_check_branch
      %11 = sbr.rel (0) target = $region5
    $region4: #{tpu_custom_call.1} parent=1 // pred_region
      %s13 = ssub.s32 256, 256
      %14 = vsyncadd [#allocation3], %s13
      %s15 = sshll.u32 [#allocation2], 4
      %s16 = int_to_ptr.vmem [resolvable:$true] %s15
      %21 = dma.hbm_to_vmem [thread:$0]  %s0, 256, %s16, [#allocation3], 128, 128, 8
    $region5: #{tpu_custom_call.1} parent=1 // pred_fallthru
      _
    // Predicated region
    $region6: #{tpu_custom_call.1} parent=1 // pred_check
      _
    $region7: #{tpu_custom_call.1} parent=1 // pred_check_branch
      %23 = sbr.rel (0) target = $region9
    $region8: #{tpu_custom_call.1} parent=1 // pred_region
      %s25 = ssub.s32 256, 256
      %26 = vsyncadd [#allocation6], %s25
      %s27 = sshll.u32 [#allocation5], 4
      %s28 = int_to_ptr.vmem [resolvable:$true] %s27
      %33 = dma.hbm_to_vmem [thread:$0]  %s1, 256, %s28, [#allocation6], 128, 128, 8
    $region9: #{tpu_custom_call.1} parent=1 // pred_fallthru
      _
    // Predicated region
    $region10: #{tpu_custom_call.1} parent=1 // pred_check
      _
    $region11: #{tpu_custom_call.1} parent=1 // pred_check_branch
      %35 = sbr.rel (0) target = $region13
    $region12: #{tpu_custom_call.1} parent=1 // pred_region
      %36 = dma.done [#allocation3], 256
    $region13: #{tpu_custom_call.1} parent=1 // pred_fallthru
      _
    // Predicated region
    $region14: #{tpu_custom_call.1} parent=1 // pred_check
      _
    $region15: #{tpu_custom_call.1} parent=1 // pred_check_branch
      %38 = sbr.rel (0) target = $region17
    $region16: #{tpu_custom_call.1} parent=1 // pred_region
      %39 = dma.done [#allocation6], 256
    $region17: #{tpu_custom_call.1} parent=1 // pred_fallthru
      _
    %v40 = vld [vmem:[#allocation2] sm:$0xff]
    %v41 = vld [vmem:[#allocation2 + $0x8] sm:$0xff]
    %v42 = vld [vmem:[#allocation5] sm:$0xff]
    %v43 = vld [vmem:[#allocation5 + $0x8] sm:$0xff]
    %vm44 = vcmp.eq.f32.partialorder %v42, 1.0
    %vm45 = vcmp.eq.f32.partialorder %v43, 1.0
    %v46 = vsub.f32 0.0, %v40
    %v47 = vsub.f32 0.0, %v41
    %v48 = vsel %vm44, %v46, %v40
    %v49 = vsel %vm45, %v47, %v41
    %v50 = vxor.u32 %v48, 2147483648
    %v51 = vxor.u32 %v49, 2147483648
    %v52 = vmul.f32 %v50, 1.442695
    %v53 = vpow.pop %v52
    %v54 = vmul.f32 %v51, 1.442695
    %v55 = vpow.pop %v54
    %v56 = vadd.f32 %v53, 1.0
    %v57 = vadd.f32 %v55, 1.0
    %v58 = vrcp.pop %v56
    %v59 = vmul.f32 1.0, %v58
    %v60 = vrcp.pop %v57
    %v61 = vmul.f32 1.0, %v60
    %v62 = vsub.f32 1.0, %v40
    %v63 = vsub.f32 1.0, %v41
    %v64 = vsel %vm44, %v40, %v62
    %v65 = vsel %vm45, %v41, %v63
    %v66 = vlog2.pop %v64
    %v67 = vmul.f32 %v66, 0.6931472
    %v68 = vlog2.pop %v65
    %v69 = vmul.f32 %v68, 0.6931472
    %v70 = vmax.f32 %v67, -100.0
    %v71 = vmax.f32 %v69, -100.0
    %v72 = vsub.f32 0.0, %v70
    %v73 = vsub.f32 0.0, %v71
    %v74 = vsel %vm44, 0.25, 0.75
    %v75 = vsel %vm45, 0.25, 0.75
    %v76 = vmul.f32 %v59, %v59
    %v77 = vmul.f32 %v61, %v61
    %v78 = vmul.f32 %v74, %v76
    %v79 = vmul.f32 %v75, %v77
    %v80 = vmul.f32 %v78, %v72
    %v81 = vmul.f32 %v79, %v73
    %v82 = vadd.f32 %v80, %v81
    %83 = vst [vmem:[#allocation7] sm:$0xff] %v82
    // Predicated region
    $region18: #{tpu_custom_call.1} parent=1 // pred_check
      _
    $region19: #{tpu_custom_call.1} parent=1 // pred_check_branch
      %85 = sbr.rel (0) target = $region21
    $region20: #{tpu_custom_call.1} parent=1 // pred_region
      %s87 = ssub.s32 128, 128
      %88 = vsyncadd [#allocation4], %s87
      %s90 = sshll.u32 [#allocation7], 4
      %s91 = int_to_ptr.vmem [resolvable:$true] %s90
      %93 = dma.vmem_to_hbm [thread:$0]  %s91, 128, %s2, [#allocation4]
    $region21: #{tpu_custom_call.1} parent=1 // pred_fallthru
      _
    // Predicated region
    $region22: #{tpu_custom_call.1} parent=1 // pred_check
      _
    $region23: #{tpu_custom_call.1} parent=1 // pred_check_branch
      %95 = sbr.rel (0) target = $region25
    $region24: #{tpu_custom_call.1} parent=1 // pred_region
      %96 = dma.done [#allocation4], 128
    $region25: #{tpu_custom_call.1} parent=1 // pred_fallthru
      _
    %97 = vsyncpa [#allocation3], 1
    %98 = vsyncpa [#allocation6], 1
    %99 = vsyncpa [#allocation4], 1

</llo_original>
